<compile_context>
chip_gen: v7x
topology: tpu7x:2x2x1
jax: 0.10.0
libtpu: 0.0.40
codegen_flags: <defaults>
</compile_context>

<pallas_src>
import functools

import jax
import jax.numpy as jnp
from jax.experimental import pallas as pl
from jax.experimental.pallas import tpu as pltpu

LANE = 128                       # pad all feature (lane) dims to this
DEFAULT_BLOCK_M = 512            # row tile (output / "parallel" axis)
DEFAULT_BLOCK_K = 4096           # reduction tile (A_hat columns per grid step)
FUSE_THRESHOLD = 1024            # n_pad <= this -> single fused kernel
X_RESIDENT_LIMIT = 12 * 1024 * 1024  # keep X fully VMEM-resident up to this (x2 buffers)


def _round_up(x, m):
    return (x + m - 1) // m * m


# ----------------------------------------------------------------------------
# Fused kernel for small graphs: both GINConvs in one program, everything
# (A_hat, X, weights) VMEM-resident.  Eval-mode dropout is the identity.
# ----------------------------------------------------------------------------
def _gin_fused_kernel(a_ref, x_ref, w1_ref, b1_ref, w2_ref, b2_ref,
                      w3_ref, b3_ref, w4_ref, b4_ref, o_ref):
    a = a_ref[...].astype(jnp.bfloat16)      # int8 (or bf16) -> bf16 on the VPU

    def mlp(h, w_a, b_a, w_b, b_b):
        h = jnp.dot(h.astype(jnp.bfloat16), w_a[...],
                    preferred_element_type=jnp.float32) + b_a[...]
        h = jnp.maximum(h, 0.0).astype(jnp.bfloat16)
        return jnp.dot(h, w_b[...], preferred_element_type=jnp.float32) + b_b[...]

    # conv1 + outer F.relu
    h = jnp.dot(a, x_ref[...], preferred_element_type=jnp.float32)
    h = jnp.maximum(mlp(h, w1_ref, b1_ref, w2_ref, b2_ref), 0.0)
    # TODO(synk): training-mode dropout (pltpu.prng_seed / prng_random_bits mask);
    # eval-mode F.dropout is the identity.
    # conv2
    h = jnp.dot(a, h.astype(jnp.bfloat16), preferred_element_type=jnp.float32)
    h = mlp(h, w3_ref, b3_ref, w4_ref, b4_ref)
    o_ref[...] = h.astype(o_ref.dtype)


def _gin_fused(a_hat, x, padded_params, *, out_dtype):
    n_pad = a_hat.shape[0]
    c_in = x.shape[1]
    w1, b1, w2, b2, w3, b3, w4, b4 = padded_params
    h_p = w1.shape[1]
    c_out_p = w4.shape[1]

    flops = int(2 * n_pad * n_pad * (c_in + h_p)
                + 2 * n_pad * (c_in * h_p + 2 * h_p * h_p + h_p * c_out_p))
    a_bytes = int(a_hat.size * a_hat.dtype.itemsize)
    x_bytes = int(x.size * x.dtype.itemsize)
    w_bytes = sum(int(p.size * p.dtype.itemsize) for p in padded_params)
    out_bytes = int(n_pad * c_out_p * jnp.dtype(out_dtype).itemsize)
    bytes_accessed = a_bytes + x_bytes + w_bytes + out_bytes
    vmem_limit = int(3 * a_bytes + 2 * x_bytes + w_bytes + (16 << 20))

    return pl.pallas_call(
        _gin_fused_kernel,
        out_shape=jax.ShapeDtypeStruct((n_pad, c_out_p), out_dtype),
        compiler_params=pltpu.CompilerParams(vmem_limit_bytes=vmem_limit),
        cost_estimate=pl.CostEstimate(flops=flops, transcendentals=0,
                                      bytes_accessed=bytes_accessed),
    )(a_hat, x, *padded_params)


# ----------------------------------------------------------------------------
# Tiled kernel for larger graphs: one GINConv = streamed (A_hat @ X) aggregation
# (int8 A widened to bf16 in VMEM) with an f32 accumulator + fused 2-layer MLP
# finalize.  Grid = (row tiles i, reduction tiles k).
# ----------------------------------------------------------------------------
def _gin_conv_kernel(a_ref, x_ref, w1_ref, b1_ref, w2_ref, b2_ref,
                     o_ref, acc_ref, *, outer_relu, block_k, x_resident):
    k = pl.program_id(1)

    a = a_ref[...].astype(jnp.bfloat16)
    if x_resident:
        start = pl.multiple_of(k * block_k, block_k)
        xk = x_ref[pl.ds(start, block_k), :]
    else:
        xk = x_ref[...]

    prod = jnp.dot(a, xk, preferred_element_type=jnp.float32)

    @pl.when(k == 0)
    def _init():
        acc_ref[...] = prod               # write first partial, no zero-fill

    @pl.when(k > 0)
    def _accumulate():
        acc_ref[...] += prod

    @pl.when(k == pl.num_programs(1) - 1)
    def _finalize():
        # Fused MLP: Linear -> ReLU -> Linear, then optional outer ReLU.
        h = acc_ref[...].astype(jnp.bfloat16)
        h = jnp.dot(h, w1_ref[...], preferred_element_type=jnp.float32) + b1_ref[...]
        h = jnp.maximum(h, 0.0).astype(jnp.bfloat16)
        h = jnp.dot(h, w2_ref[...], preferred_element_type=jnp.float32) + b2_ref[...]
        if outer_relu:
            h = jnp.maximum(h, 0.0)
        o_ref[...] = h.astype(o_ref.dtype)


def _gin_conv(a_hat, x, w1, b1, w2, b2, *, outer_relu, out_dtype, bm, bk):
    n_pad = a_hat.shape[0]
    assert n_pad % bm == 0 and n_pad % bk == 0, "padding must match tile sizes"
    c_in, c_mid = w1.shape
    c_out = w2.shape[1]
    out_itemsize = jnp.dtype(out_dtype).itemsize

    x_bytes = int(x.size * x.dtype.itemsize)
    x_resident = (2 * x_bytes) <= X_RESIDENT_LIMIT
    if x_resident:
        x_spec = pl.BlockSpec((n_pad, c_in), lambda i, k: (0, 0))
        x_read_bytes = x_bytes
        x_vmem = 2 * x_bytes
    else:
        x_spec = pl.BlockSpec((bk, c_in), lambda i, k: (k, 0))
        x_read_bytes = x_bytes * (n_pad // bm)      # re-streamed once per row tile
        x_vmem = 2 * bk * c_in * x.dtype.itemsize

    a_tile_bytes = bm * bk * a_hat.dtype.itemsize
    w_bytes = sum(int(p.size * p.dtype.itemsize) for p in (w1, b1, w2, b2))
    vmem_limit = int(2 * a_tile_bytes          # double-buffered int8/bf16 A tile
                     + bm * bk * 2             # bf16-widened A tile (compute temp)
                     + x_vmem
                     + 2 * bm * c_out * out_itemsize
                     + bm * c_in * 4           # f32 accumulator
                     + 2 * w_bytes
                     + (8 << 20))              # headroom for compiler temps

    flops = int(2 * n_pad * n_pad * c_in
                + 2 * n_pad * c_in * c_mid
                + 2 * n_pad * c_mid * c_out)
    bytes_accessed = int(a_hat.size * a_hat.dtype.itemsize + x_read_bytes
                         + w_bytes + n_pad * c_out * out_itemsize)

    kernel = functools.partial(_gin_conv_kernel, outer_relu=outer_relu,
                               block_k=bk, x_resident=x_resident)
    return pl.pallas_call(
        kernel,
        out_shape=jax.ShapeDtypeStruct((n_pad, c_out), out_dtype),
        grid_spec=pltpu.PrefetchScalarGridSpec(
            num_scalar_prefetch=0,
            grid=(n_pad // bm, n_pad // bk),
            in_specs=[
                pl.BlockSpec((bm, bk), lambda i, k: (i, k)),        # A_hat tile (streamed)
                x_spec,                                             # X (resident or per-k)
                pl.BlockSpec((c_in, c_mid), lambda i, k: (0, 0)),   # W1
                pl.BlockSpec((1, c_mid), lambda i, k: (0, 0)),      # b1
                pl.BlockSpec((c_mid, c_out), lambda i, k: (0, 0)),  # W2
                pl.BlockSpec((1, c_out), lambda i, k: (0, 0)),      # b2
            ],
            out_specs=pl.BlockSpec((bm, c_out), lambda i, k: (i, 0)),
            scratch_shapes=[pltpu.VMEM((bm, c_in), jnp.float32)],   # f32 accumulator
        ),
        compiler_params=pltpu.CompilerParams(
            dimension_semantics=("parallel", "arbitrary"),
            vmem_limit_bytes=vmem_limit),
        cost_estimate=pl.CostEstimate(flops=flops, transcendentals=0,
                                      bytes_accessed=bytes_accessed),
    )(a_hat, x, w1, b1, w2, b2)


def _choose_tiles(n_pad, block_m, block_k):
    """Row tile bm and the largest reduction tile bk <= block_k dividing n_pad."""
    bm = min(block_m, n_pad)
    bk = bm
    limit = min(block_k, n_pad)
    cand = bm
    while cand <= limit:
        if n_pad % cand == 0:
            bk = cand
        cand += bm
    return bm, bk


# ----------------------------------------------------------------------------
# One-time preprocessing (hoisted out of the per-forward path).
# ----------------------------------------------------------------------------
def build_a_hat(edge_index, num_nodes, n_pad, *, eps=0.0):
    """Dense padded A_hat = A + (1+eps)I.

    A[i, j] = #edges j -> i (PyG source_to_target 'add' aggregation).
    Stored as int8 (exact for multiplicities <= 127) and widened to bf16 on the
    VPU inside the kernels; bf16 fallback when eps != 0 (non-integer diagonal).
    """
    src, dst = edge_index[0], edge_index[1]
    idx = jnp.arange(num_nodes)
    if eps == 0.0:
        a = jnp.zeros((n_pad, n_pad), jnp.int32).at[dst, src].add(1)
        a = a.at[idx, idx].add(1)
        return a.astype(jnp.int8)
    a = jnp.zeros((n_pad, n_pad), jnp.float32).at[dst, src].add(1.0)
    a = a.at[idx, idx].add(1.0 + eps)
    return a.astype(jnp.bfloat16)


def prepare_inputs(x, edge_index, params, *, eps=0.0,
                   block_m=DEFAULT_BLOCK_M, fuse_threshold=FUSE_THRESHOLD):
    """Pad nodes to a tile multiple, pad all feature dims to 128, cast to bf16."""
    n, c_in = x.shape
    w1, b1, w2, b2, w3, b3, w4, b4 = params
    hidden = w1.shape[1]
    c_out = w4.shape[1]

    n_pad = _round_up(n, LANE)
    if n_pad > fuse_threshold:                       # tiled path: row-tile multiple
        n_pad = _round_up(n_pad, min(block_m, n_pad))
    c_in_p = _round_up(c_in, LANE)
    h_p = _round_up(hidden, LANE)
    c_out_p = _round_up(c_out, LANE)

    a_hat = build_a_hat(edge_index, n, n_pad, eps=eps)
    x_pad = jnp.zeros((n_pad, c_in_p), jnp.bfloat16).at[:n, :c_in].set(
        x.astype(jnp.bfloat16))

    def pad_w(w, r, c):
        return jnp.zeros((r, c), jnp.bfloat16).at[:w.shape[0], :w.shape[1]].set(
            w.astype(jnp.bfloat16))

    def pad_b(b, c):
        return jnp.zeros((1, c), jnp.float32).at[:, :b.shape[1]].set(b)

    padded_params = (pad_w(w1, c_in_p, h_p), pad_b(b1, h_p),
                     pad_w(w2, h_p, h_p), pad_b(b2, h_p),
                     pad_w(w3, h_p, h_p), pad_b(b3, h_p),
                     pad_w(w4, h_p, c_out_p), pad_b(b4, c_out_p))
    return a_hat, x_pad, padded_params


def gin_forward(x_pad, a_hat, padded_params, *, num_nodes, out_channels,
                block_m=DEFAULT_BLOCK_M, block_k=DEFAULT_BLOCK_K,
                fuse_threshold=FUSE_THRESHOLD):
    """Full GIN forward on padded inputs; returns (num_nodes, out_channels) f32."""
    n_pad = a_hat.shape[0]
    w1, b1, w2, b2, w3, b3, w4, b4 = padded_params

    if n_pad <= fuse_threshold:
        # Tiny graphs: one launch, everything resident, no HBM round-trip for h.
        out = _gin_fused(a_hat, x_pad, padded_params, out_dtype=jnp.float32)
    else:
        bm, bk = _choose_tiles(n_pad, block_m, block_k)
        # conv1 + outer F.relu (fused); intermediate kept in bf16.
        h = _gin_conv(a_hat, x_pad, w1, b1, w2, b2,
                      outer_relu=True, out_dtype=jnp.bfloat16, bm=bm, bk=bk)
        # TODO(synk): for mid-size graphs keep A_hat VMEM-resident across both
        # convs (layer grid axis / manual copy) to halve total A_hat HBM traffic.
        out = _gin_conv(a_hat, h, w3, b3, w4, b4,
                        outer_relu=False, out_dtype=jnp.float32, bm=bm, bk=bk)
    return out[:num_nodes, :out_channels]


# ----------------------------------------------------------------------------
# Parameters and pure-JAX reference (same bf16-operand / f32-accumulate recipe).
# ----------------------------------------------------------------------------
def init_params(key, in_channels, hidden_channels, out_channels):
    ks = jax.random.split(key, 8)

    def lin(kw, kb, fan_in, fan_out):
        bound = 1.0 / jnp.sqrt(jnp.float32(fan_in))
        w = jax.random.uniform(kw, (fan_in, fan_out), jnp.float32, -bound, bound)
        b = jax.random.uniform(kb, (1, fan_out), jnp.float32, -bound, bound)
        return w, b

    w1, b1 = lin(ks[0], ks[1], in_channels, hidden_channels)
    w2, b2 = lin(ks[2], ks[3], hidden_channels, hidden_channels)
    w3, b3 = lin(ks[4], ks[5], hidden_channels, hidden_channels)
    w4, b4 = lin(ks[6], ks[7], hidden_channels, out_channels)
    return (w1, b1, w2, b2, w3, b3, w4, b4)


def reference_forward(x, edge_index, params, *, eps=0.0):
    """Pure-JAX reference mirroring the kernel's bf16-operand / f32-accumulate math."""
    n = x.shape[0]
    src, dst = edge_index[0], edge_index[1]
    a = jnp.zeros((n, n), jnp.float32).at[dst, src].add(1.0)
    a = a.at[jnp.arange(n), jnp.arange(n)].add(1.0 + eps)
    a = a.astype(jnp.bfloat16)
    w1, b1, w2, b2, w3, b3, w4, b4 = params

    def mlp(h, wa, ba, wb, bb):
        h = jnp.dot(h.astype(jnp.bfloat16), wa.astype(jnp.bfloat16),
                    preferred_element_type=jnp.float32) + ba
        h = jnp.maximum(h, 0.0)
        h = jnp.dot(h.astype(jnp.bfloat16), wb.astype(jnp.bfloat16),
                    preferred_element_type=jnp.float32) + bb
        return h

    h = jnp.dot(a, x.astype(jnp.bfloat16), preferred_element_type=jnp.float32)
    h = jnp.maximum(mlp(h, w1, b1, w2, b2), 0.0).astype(jnp.bfloat16)
    h = jnp.dot(a, h, preferred_element_type=jnp.float32)
    return mlp(h, w3, b3, w4, b4)


if __name__ == "__main__":
    key = jax.random.PRNGKey(0)
    in_channels, hidden_channels, out_channels = 16, 32, 8

    def make_graph(k, num_nodes, num_edges):
        k_x, k_s, k_d = jax.random.split(k, 3)
        x = jax.random.normal(k_x, (num_nodes, in_channels), jnp.float32)
        src = jax.random.randint(k_s, (num_edges,), 0, num_nodes, jnp.int32)
        dst = jax.random.randint(k_d, (num_edges,), 0, num_nodes, jnp.int32)
        return x, jnp.stack([src, dst], axis=0)

    k_g1, k_g2, k_p = jax.random.split(key, 3)
    params = init_params(k_p, in_channels, hidden_channels, out_channels)

    # --- Test 1: tiny graph -> fused single-kernel path (the demo shape). ---
    x1, e1 = make_graph(k_g1, 32, 96)
    a1, xp1, pp1 = prepare_inputs(x1, e1, params)
    out1 = jax.block_until_ready(
        gin_forward(xp1, a1, pp1, num_nodes=32, out_channels=out_channels))
    ref1 = reference_forward(x1, e1, params)
    assert out1.shape == (32, out_channels)
    assert jnp.allclose(out1, ref1, atol=3e-2, rtol=3e-2), "fused path mismatch"

    # --- Test 2: larger graph with small forced tiles -> tiled/streamed path
    #     (multiple row tiles, multiple reduction steps, resident-X slicing). ---
    x2, e2 = make_graph(k_g2, 1200, 3600)
    a2, xp2, pp2 = prepare_inputs(x2, e2, params, block_m=128)
    out2 = jax.block_until_ready(
        gin_forward(xp2, a2, pp2, num_nodes=1200, out_channels=out_channels,
                    block_m=128, block_k=256))
    ref2 = reference_forward(x2, e2, params)
    assert out2.shape == (1200, out_channels)
    assert jnp.allclose(out2, ref2, atol=3e-2, rtol=3e-2), "tiled path mismatch"

    print("KERNEL_OK")
</pallas_src>

<mosaic_0001>
module attributes {stable_mosaic.version = 11 : i64} {
  func.func @_gin_fused_kernel(%arg0: memref<128x128xi8, #tpu.memory_space<vmem>>, %arg1: memref<128x128xbf16, #tpu.memory_space<vmem>>, %arg2: memref<128x128xbf16, #tpu.memory_space<vmem>>, %arg3: memref<1x128xf32, #tpu.memory_space<vmem>>, %arg4: memref<128x128xbf16, #tpu.memory_space<vmem>>, %arg5: memref<1x128xf32, #tpu.memory_space<vmem>>, %arg6: memref<128x128xbf16, #tpu.memory_space<vmem>>, %arg7: memref<1x128xf32, #tpu.memory_space<vmem>>, %arg8: memref<128x128xbf16, #tpu.memory_space<vmem>>, %arg9: memref<1x128xf32, #tpu.memory_space<vmem>>, %arg10: memref<128x128xf32, #tpu.memory_space<vmem>>) attributes {dimension_semantics = [], scalar_prefetch = 0 : i64, scratch_operands = 0 : i64, tpu.core_type = #tpu.core_type<tc>} {
    %c0 = arith.constant 0 : index
    %c0_0 = arith.constant 0 : index
    %0 = vector.load %arg0[%c0, %c0_0] : memref<128x128xi8, #tpu.memory_space<vmem>>, vector<128x128xi8>
    %1 = arith.sitofp %0 : vector<128x128xi8> to vector<128x128xbf16>
    %c0_1 = arith.constant 0 : index
    %c0_2 = arith.constant 0 : index
    %2 = vector.load %arg1[%c0_1, %c0_2] : memref<128x128xbf16, #tpu.memory_space<vmem>>, vector<128x128xbf16>
    %cst = arith.constant dense<0.000000e+00> : vector<128x128xf32>
    %3 = tpu.matmul %1, %2, %cst {dimension_numbers = #tpu.dot_dimension_numbers<[1], [0], [0], [1], [0, 0, 1, 1], [], []>} : vector<128x128xbf16>, vector<128x128xbf16>, vector<128x128xf32> -> vector<128x128xf32>
    %4 = arith.truncf %3 : vector<128x128xf32> to vector<128x128xbf16>
    %c0_3 = arith.constant 0 : index
    %c0_4 = arith.constant 0 : index
    %5 = vector.load %arg2[%c0_3, %c0_4] : memref<128x128xbf16, #tpu.memory_space<vmem>>, vector<128x128xbf16>
    %cst_5 = arith.constant dense<0.000000e+00> : vector<128x128xf32>
    %6 = tpu.matmul %4, %5, %cst_5 {dimension_numbers = #tpu.dot_dimension_numbers<[1], [0], [0], [1], [0, 0, 1, 1], [], []>} : vector<128x128xbf16>, vector<128x128xbf16>, vector<128x128xf32> -> vector<128x128xf32>
    %c0_6 = arith.constant 0 : index
    %c0_7 = arith.constant 0 : index
    %7 = vector.load %arg3[%c0_6, %c0_7] : memref<1x128xf32, #tpu.memory_space<vmem>>, vector<1x128xf32>
    %8 = vector.broadcast %7 : vector<1x128xf32> to vector<128x128xf32>
    %9 = arith.addf %6, %8 : vector<128x128xf32>
    %cst_8 = arith.constant 0.000000e+00 : f32
    %10 = vector.broadcast %cst_8 : f32 to vector<128x128xf32>
    %11 = arith.maximumf %9, %10 : vector<128x128xf32>
    %12 = arith.truncf %11 : vector<128x128xf32> to vector<128x128xbf16>
    %c0_9 = arith.constant 0 : index
    %c0_10 = arith.constant 0 : index
    %13 = vector.load %arg4[%c0_9, %c0_10] : memref<128x128xbf16, #tpu.memory_space<vmem>>, vector<128x128xbf16>
    %cst_11 = arith.constant dense<0.000000e+00> : vector<128x128xf32>
    %14 = tpu.matmul %12, %13, %cst_11 {dimension_numbers = #tpu.dot_dimension_numbers<[1], [0], [0], [1], [0, 0, 1, 1], [], []>} : vector<128x128xbf16>, vector<128x128xbf16>, vector<128x128xf32> -> vector<128x128xf32>
    %c0_12 = arith.constant 0 : index
    %c0_13 = arith.constant 0 : index
    %15 = vector.load %arg5[%c0_12, %c0_13] : memref<1x128xf32, #tpu.memory_space<vmem>>, vector<1x128xf32>
    %16 = vector.broadcast %15 : vector<1x128xf32> to vector<128x128xf32>
    %17 = arith.addf %14, %16 : vector<128x128xf32>
    %cst_14 = arith.constant 0.000000e+00 : f32
    %18 = vector.broadcast %cst_14 : f32 to vector<128x128xf32>
    %19 = arith.maximumf %17, %18 : vector<128x128xf32>
    %20 = arith.truncf %19 : vector<128x128xf32> to vector<128x128xbf16>
    %cst_15 = arith.constant dense<0.000000e+00> : vector<128x128xf32>
    %21 = tpu.matmul %1, %20, %cst_15 {dimension_numbers = #tpu.dot_dimension_numbers<[1], [0], [0], [1], [0, 0, 1, 1], [], []>} : vector<128x128xbf16>, vector<128x128xbf16>, vector<128x128xf32> -> vector<128x128xf32>
    %22 = arith.truncf %21 : vector<128x128xf32> to vector<128x128xbf16>
    %c0_16 = arith.constant 0 : index
    %c0_17 = arith.constant 0 : index
    %23 = vector.load %arg6[%c0_16, %c0_17] : memref<128x128xbf16, #tpu.memory_space<vmem>>, vector<128x128xbf16>
    %cst_18 = arith.constant dense<0.000000e+00> : vector<128x128xf32>
    %24 = tpu.matmul %22, %23, %cst_18 {dimension_numbers = #tpu.dot_dimension_numbers<[1], [0], [0], [1], [0, 0, 1, 1], [], []>} : vector<128x128xbf16>, vector<128x128xbf16>, vector<128x128xf32> -> vector<128x128xf32>
    %c0_19 = arith.constant 0 : index
    %c0_20 = arith.constant 0 : index
    %25 = vector.load %arg7[%c0_19, %c0_20] : memref<1x128xf32, #tpu.memory_space<vmem>>, vector<1x128xf32>
    %26 = vector.broadcast %25 : vector<1x128xf32> to vector<128x128xf32>
    %27 = arith.addf %24, %26 : vector<128x128xf32>
    %cst_21 = arith.constant 0.000000e+00 : f32
    %28 = vector.broadcast %cst_21 : f32 to vector<128x128xf32>
    %29 = arith.maximumf %27, %28 : vector<128x128xf32>
    %30 = arith.truncf %29 : vector<128x128xf32> to vector<128x128xbf16>
    %c0_22 = arith.constant 0 : index
    %c0_23 = arith.constant 0 : index
    %31 = vector.load %arg8[%c0_22, %c0_23] : memref<128x128xbf16, #tpu.memory_space<vmem>>, vector<128x128xbf16>
    %cst_24 = arith.constant dense<0.000000e+00> : vector<128x128xf32>
    %32 = tpu.matmul %30, %31, %cst_24 {dimension_numbers = #tpu.dot_dimension_numbers<[1], [0], [0], [1], [0, 0, 1, 1], [], []>} : vector<128x128xbf16>, vector<128x128xbf16>, vector<128x128xf32> -> vector<128x128xf32>
    %c0_25 = arith.constant 0 : index
    %c0_26 = arith.constant 0 : index
    %33 = vector.load %arg9[%c0_25, %c0_26] : memref<1x128xf32, #tpu.memory_space<vmem>>, vector<1x128xf32>
    %34 = vector.broadcast %33 : vector<1x128xf32> to vector<128x128xf32>
    %35 = arith.addf %32, %34 : vector<128x128xf32>
    %c0_27 = arith.constant 0 : index
    %c0_28 = arith.constant 0 : index
    %36 = vector.load %arg10[%c0_27, %c0_28] : memref<128x128xf32, #tpu.memory_space<vmem>>, vector<128x128xf32>
    tpu.vector_store %arg10[%c0_27, %c0_28], %35 {strides = array<i32>} : memref<128x128xf32, #tpu.memory_space<vmem>>, vector<128x128xf32>,
    return
  }
}

</mosaic_0001>

<llo_original>
// kernel: tpu_custom_call.1
$region0: #{tpu_custom_call.1}
  #allocation0 [shape = 'u32[]', space=smem, size = 0x4, offset = 0x4, fixed_abs, tag = 'smem constant byte address 0x4 - core index']
  #allocation1 [shape = 'u32[144,128]{1,0:T(1,128)}', space=vmem, size = 0x12000, scoped, tag = 'internal scratch']
  %s0 = inlined_call_operand.hbm [shape: s8[128,128], index: 0, kind: input, shape index: {}]
  %s1 = inlined_call_operand.hbm [shape: bf16[128,128], index: 1, kind: input, shape index: {}]
  %s2 = inlined_call_operand.hbm [shape: bf16[128,128], index: 2, kind: input, shape index: {}]
  %s3 = inlined_call_operand.vmem [shape: f32[1,128], index: 3, kind: input, shape index: {}]
  %s4 = inlined_call_operand.hbm [shape: bf16[128,128], index: 4, kind: input, shape index: {}]
  %s5 = inlined_call_operand.vmem [shape: f32[1,128], index: 5, kind: input, shape index: {}]
  %s6 = inlined_call_operand.hbm [shape: bf16[128,128], index: 6, kind: input, shape index: {}]
  %s7 = inlined_call_operand.vmem [shape: f32[1,128], index: 7, kind: input, shape index: {}]
  %s8 = inlined_call_operand.hbm [shape: bf16[128,128], index: 8, kind: input, shape index: {}]
  %s9 = inlined_call_operand.vmem [shape: f32[1,128], index: 9, kind: input, shape index: {}]
  %s10 = inlined_call_operand.hbm [shape: f32[128,128], index: 10, kind: output, shape index: {}]
  %s11 = sld [smem:[#allocation0]]
  $region74: #{tpu_custom_call.1} parent=0
    _
  %s13 = ssub.s32 1, %s11
  %s14 = scalar_select 0, %s13, %s11
  $region1: #{tpu_custom_call.1} parent=0
    #allocation2 [shape = 'u8[16384]{0}', space=vmem, size = 0x4000, scoped, tag = 'input window, operand 0, single buffered']
    #allocation3 [shape = 's32[1]{0}', space=sflag, size = 0x4, scoped, tag = 'scoped memory for tpu_custom_call.1']
    #allocation4 [shape = 's32[1]{0}', space=sflag, size = 0x4, scoped, tag = 'scoped memory for tpu_custom_call.1']
    #allocation5 [shape = 'u8[32768]{0}', space=vmem, size = 0x8000, scoped, tag = 'input window, operand 1, single buffered']
    #allocation6 [shape = 's32[1]{0}', space=sflag, size = 0x4, scoped, tag = 'scoped memory for tpu_custom_call.1']
    #allocation7 [shape = 'u8[32768]{0}', space=vmem, size = 0x8000, scoped, tag = 'input window, operand 2, single buffered']
    #allocation8 [shape = 'u8[32768]{0}', space=vmem, size = 0x8000, scoped, tag = 'input window, operand 4, single buffered']
    #allocation9 [shape = 's32[1]{0}', space=sflag, size = 0x4, scoped, tag = 'scoped memory for tpu_custom_call.1']
    #allocation10 [shape = 'u8[32768]{0}', space=vmem, size = 0x8000, scoped, tag = 'input window, operand 6, single buffered']
    #allocation11 [shape = 'u8[32768]{0}', space=vmem, size = 0x8000, scoped, tag = 'input window, operand 8, single buffered']
    #allocation12 [shape = 's32[1]{0}', space=sflag, size = 0x4, scoped, tag = 'scoped memory for tpu_custom_call.1']
    #allocation13 [shape = 'u8[65536]{0}', space=vmem, size = 0x10000, scoped, tag = 'output window, operand 0, single buffered']
    %15 = vsyncpa [#allocation3], 0
    %16 = vsyncpa [#allocation6], 0
    %17 = vsyncpa [#allocation9], 0
    %18 = vsyncpa [#allocation12], 0
    %19 = vsyncpa [#allocation4], 0
    // Predicated region
    $region2: #{tpu_custom_call.1} parent=1 // pred_check
      _
    $region3: #{tpu_custom_call.1} parent=1 // pred_check_branch
      %21 = sbr.rel (0) target = $region5
    $region4: #{tpu_custom_call.1} parent=1 // pred_region
      %s23 = ssub.s32 512, 512
      %24 = vsyncadd [#allocation3], %s23
      %s25 = sshll.u32 [#allocation2], 4
      %s26 = int_to_ptr.vmem [resolvable:$true] %s25
      %31 = dma.hbm_to_vmem [thread:$0]  %s0, 512, %s26, [#allocation3], 128, 128, 8
    $region5: #{tpu_custom_call.1} parent=1 // pred_fallthru
      _
    // Predicated region
    $region6: #{tpu_custom_call.1} parent=1 // pred_check
      _
    $region7: #{tpu_custom_call.1} parent=1 // pred_check_branch
      %33 = sbr.rel (0) target = $region9
    $region8: #{tpu_custom_call.1} parent=1 // pred_region
      %s35 = ssub.s32 1024, 1024
      %36 = vsyncadd [#allocation6], %s35
      %s37 = sshll.u32 [#allocation5], 4
      %s38 = int_to_ptr.vmem [resolvable:$true] %s37
      %43 = dma.hbm_to_vmem [thread:$0]  %s1, 1024, %s38, [#allocation6], 64, 64, 4
    $region9: #{tpu_custom_call.1} parent=1 // pred_fallthru
      _
    // Predicated region
    $region10: #{tpu_custom_call.1} parent=1 // pred_check
      _
    $region11: #{tpu_custom_call.1} parent=1 // pred_check_branch
      %45 = sbr.rel (0) target = $region13
    $region12: #{tpu_custom_call.1} parent=1 // pred_region
      %s47 = ssub.s32 1024, 1024
      %48 = vsyncadd [#allocation6], %s47
      %s49 = sshll.u32 [#allocation7], 4
      %s50 = int_to_ptr.vmem [resolvable:$true] %s49
      %55 = dma.hbm_to_vmem [thread:$0]  %s2, 1024, %s50, [#allocation6], 64, 64, 4
    $region13: #{tpu_custom_call.1} parent=1 // pred_fallthru
      _
    // Predicated region
    $region14: #{tpu_custom_call.1} parent=1 // pred_check
      _
    $region15: #{tpu_custom_call.1} parent=1 // pred_check_branch
      %57 = sbr.rel (0) target = $region17
    $region16: #{tpu_custom_call.1} parent=1 // pred_region
      _
    $region17: #{tpu_custom_call.1} parent=1 // pred_fallthru
      _
    // Predicated region
    $region18: #{tpu_custom_call.1} parent=1 // pred_check
      _
    $region19: #{tpu_custom_call.1} parent=1 // pred_check_branch
      %59 = sbr.rel (0) target = $region21
    $region20: #{tpu_custom_call.1} parent=1 // pred_region
      %s61 = ssub.s32 1024, 1024
      %62 = vsyncadd [#allocation9], %s61
      %s63 = sshll.u32 [#allocation8], 4
      %s64 = int_to_ptr.vmem [resolvable:$true] %s63
      %69 = dma.hbm_to_vmem [thread:$0]  %s4, 1024, %s64, [#allocation9], 64, 64, 4
    $region21: #{tpu_custom_call.1} parent=1 // pred_fallthru
      _
    // Predicated region
    $region22: #{tpu_custom_call.1} parent=1 // pred_check
      _
    $region23: #{tpu_custom_call.1} parent=1 // pred_check_branch
      %71 = sbr.rel (0) target = $region25
    $region24: #{tpu_custom_call.1} parent=1 // pred_region
      _
    $region25: #{tpu_custom_call.1} parent=1 // pred_fallthru
      _
    // Predicated region
    $region26: #{tpu_custom_call.1} parent=1 // pred_check
      _
    $region27: #{tpu_custom_call.1} parent=1 // pred_check_branch
      %73 = sbr.rel (0) target = $region29
    $region28: #{tpu_custom_call.1} parent=1 // pred_region
      %s75 = ssub.s32 1024, 1024
      %76 = vsyncadd [#allocation9], %s75
      %s77 = sshll.u32 [#allocation10], 4
      %s78 = int_to_ptr.vmem [resolvable:$true] %s77
      %83 = dma.hbm_to_vmem [thread:$0]  %s6, 1024, %s78, [#allocation9], 64, 64, 4
    $region29: #{tpu_custom_call.1} parent=1 // pred_fallthru
      _
    // Predicated region
    $region30: #{tpu_custom_call.1} parent=1 // pred_check
      _
    $region31: #{tpu_custom_call.1} parent=1 // pred_check_branch
      %85 = sbr.rel (0) target = $region33
    $region32: #{tpu_custom_call.1} parent=1 // pred_region
      _
    $region33: #{tpu_custom_call.1} parent=1 // pred_fallthru
      _
    // Predicated region
    $region34: #{tpu_custom_call.1} parent=1 // pred_check
      _
    $region35: #{tpu_custom_call.1} parent=1 // pred_check_branch
      %87 = sbr.rel (0) target = $region37
    $region36: #{tpu_custom_call.1} parent=1 // pred_region
      %s89 = ssub.s32 1024, 1024
      %90 = vsyncadd [#allocation12], %s89
      %s91 = sshll.u32 [#allocation11], 4
      %s92 = int_to_ptr.vmem [resolvable:$true] %s91
      %97 = dma.hbm_to_vmem [thread:$0]  %s8, 1024, %s92, [#allocation12], 64, 64, 4
    $region37: #{tpu_custom_call.1} parent=1 // pred_fallthru
      _
    // Predicated region
    $region38: #{tpu_custom_call.1} parent=1 // pred_check
      _
    $region39: #{tpu_custom_call.1} parent=1 // pred_check_branch
      %99 = sbr.rel (0) target = $region41
    $region40: #{tpu_custom_call.1} parent=1 // pred_region
      _
    $region41: #{tpu_custom_call.1} parent=1 // pred_fallthru
      _
    // Predicated region
    $region42: #{tpu_custom_call.1} parent=1 // pred_check
      _
    $region43: #{tpu_custom_call.1} parent=1 // pred_check_branch
      %101 = sbr.rel (0) target = $region45
    $region44: #{tpu_custom_call.1} parent=1 // pred_region
      %102 = dma.done [#allocation3], 512
    $region45: #{tpu_custom_call.1} parent=1 // pred_fallthru
      _
    // Predicated region
    $region46: #{tpu_custom_call.1} parent=1 // pred_check
      _
    $region47: #{tpu_custom_call.1} parent=1 // pred_check_branch
      %104 = sbr.rel (0) target = $region49
    $region48: #{tpu_custom_call.1} parent=1 // pred_region
      %105 = dma.done [#allocation6], 1024
    $region49: #{tpu_custom_call.1} parent=1 // pred_fallthru
      _
    // Predicated region
    $region50: #{tpu_custom_call.1} parent=1 // pred_check
      _
    $region51: #{tpu_custom_call.1} parent=1 // pred_check_branch
      %107 = sbr.rel (0) target = $region53
    $region52: #{tpu_custom_call.1} parent=1 // pred_region
      %108 = dma.done [#allocation6], 1024
    $region53: #{tpu_custom_call.1} parent=1 // pred_fallthru
      _
    // Predicated region
    $region54: #{tpu_custom_call.1} parent=1 // pred_check
      _
    $region55: #{tpu_custom_call.1} parent=1 // pred_check_branch
      %110 = sbr.rel (0) target = $region57
    $region56: #{tpu_custom_call.1} parent=1 // pred_region
      %111 = dma.done [#allocation9], 1024
    $region57: #{tpu_custom_call.1} parent=1 // pred_fallthru
      _
    // Predicated region
    $region58: #{tpu_custom_call.1} parent=1 // pred_check
      _
    $region59: #{tpu_custom_call.1} parent=1 // pred_check_branch
      %113 = sbr.rel (0) target = $region61
    $region60: #{tpu_custom_call.1} parent=1 // pred_region
      %114 = dma.done [#allocation9], 1024
    $region61: #{tpu_custom_call.1} parent=1 // pred_fallthru
      _
    // Predicated region
    $region62: #{tpu_custom_call.1} parent=1 // pred_check
      _
    $region63: #{tpu_custom_call.1} parent=1 // pred_check_branch
      %116 = sbr.rel (0) target = $region65
    $region64: #{tpu_custom_call.1} parent=1 // pred_region
      %117 = dma.done [#allocation12], 1024
    $region65: #{tpu_custom_call.1} parent=1 // pred_fallthru
      _
    %v119 = vld [vmem:[#allocation2] sm:$0xff]
    %v120 = vld [vmem:[#allocation2 + $0x8] sm:$0xff]
    %v121 = vld [vmem:[#allocation2 + $0x10] sm:$0xff]
    %v122 = vld [vmem:[#allocation2 + $0x18] sm:$0xff]
    %v123 = vunpack.c.l.s8.bf16 %v119
    %v124 = vunpack.c.h.s8.bf16 %v119
    %v125 = vunpack.c.l.s8.bf16 %v120
    %v126 = vunpack.c.h.s8.bf16 %v120
    %v127 = vunpack.c.l.s8.bf16 %v121
    %v128 = vunpack.c.h.s8.bf16 %v121
    %v129 = vunpack.c.l.s8.bf16 %v122
    %v130 = vunpack.c.h.s8.bf16 %v122
    %v131 = vld [vmem:[#allocation5] sm:$0xf]
    %v132 = vld [vmem:[#allocation5 + $0x4] sm:$0xf]
    %v133 = vld [vmem:[#allocation5 + $0x8] sm:$0xf]
    %v134 = vld [vmem:[#allocation5 + $0xc] sm:$0xf]
    %v135 = vld [vmem:[#allocation5 + $0x10] sm:$0xf]
    %v136 = vld [vmem:[#allocation5 + $0x14] sm:$0xf]
    %v137 = vld [vmem:[#allocation5 + $0x18] sm:$0xf]
    %v138 = vld [vmem:[#allocation5 + $0x1c] sm:$0xf]
    %v139 = vld [vmem:[#allocation5 + $0x20] sm:$0xf]
    %v140 = vld [vmem:[#allocation5 + $0x24] sm:$0xf]
    %v141 = vld [vmem:[#allocation5 + $0x28] sm:$0xf]
    %v142 = vld [vmem:[#allocation5 + $0x2c] sm:$0xf]
    %v143 = vld [vmem:[#allocation5 + $0x30] sm:$0xf]
    %v144 = vld [vmem:[#allocation5 + $0x34] sm:$0xf]
    %v145 = vld [vmem:[#allocation5 + $0x38] sm:$0xf]
    %v146 = vld [vmem:[#allocation5 + $0x3c] sm:$0xf]
    %v163 = vunpack.c.l.b16 %v131
    %v164 = vunpack.c.l.b16 %v132
    %v165 = vunpack.c.l.b16 %v133
    %v166 = vunpack.c.l.b16 %v134
    %v167 = vunpack.c.l.b16 %v135
    %v168 = vunpack.c.l.b16 %v136
    %v169 = vunpack.c.l.b16 %v137
    %v170 = vunpack.c.l.b16 %v138
    %v171 = vunpack.c.l.b16 %v139
    %v172 = vunpack.c.l.b16 %v140
    %v173 = vunpack.c.l.b16 %v141
    %v174 = vunpack.c.l.b16 %v142
    %v175 = vunpack.c.l.b16 %v143
    %v176 = vunpack.c.l.b16 %v144
    %v177 = vunpack.c.l.b16 %v145
    %v178 = vunpack.c.l.b16 %v146
    %v179 = vpack.c.b16 %v164, %v163
    %v180 = vpack.c.b16 %v166, %v165
    %v181 = vpack.c.b16 %v168, %v167
    %v182 = vpack.c.b16 %v170, %v169
    %v183 = vpack.c.b16 %v172, %v171
    %v184 = vpack.c.b16 %v174, %v173
    %v185 = vpack.c.b16 %v176, %v175
    %v186 = vpack.c.b16 %v178, %v177
    %195 = vmatprep.subr.bf16.mxu0 0
    %196 = vmatpush1.bf16.msra.mxu0 %v179
    %197 = vmatprep.subr.bf16.mxu0 0
    %198 = vmatpush1.bf16.msra.mxu0 %v180
    %199 = vmatprep.subr.bf16.mxu0 0
    %200 = vmatpush1.bf16.msra.mxu0 %v181
    %201 = vmatprep.subr.bf16.mxu0 0
    %202 = vmatpush1.bf16.msra.mxu0 %v182
    %203 = vmatprep.subr.bf16.mxu0 0
    %204 = vmatpush1.bf16.msra.mxu0 %v183
    %205 = vmatprep.subr.bf16.mxu0 0
    %206 = vmatpush1.bf16.msra.mxu0 %v184
    %207 = vmatprep.subr.bf16.mxu0 0
    %208 = vmatpush1.bf16.msra.mxu0 %v185
    %209 = vmatprep.subr.bf16.mxu0 0
    %210 = vmatpush1.bf16.msra.mxu0 %v186
    %211 = vmatprep.subr.bf16.mxu0 0
    %212 = vmatpush1.bf16.msra.mxu0 0
    %213 = vmatprep.subr.bf16.mxu0 0
    %214 = vmatpush1.bf16.msra.mxu0 0
    %215 = vmatprep.subr.bf16.mxu0 0
    %216 = vmatpush1.bf16.msra.mxu0 0
    %217 = vmatprep.subr.bf16.mxu0 0
    %218 = vmatpush1.bf16.msra.mxu0 0
    %219 = vmatprep.subr.bf16.mxu0 0
    %220 = vmatpush1.bf16.msra.mxu0 0
    %221 = vmatprep.subr.bf16.mxu0 0
    %222 = vmatpush1.bf16.msra.mxu0 0
    %223 = vmatprep.subr.bf16.mxu0 0
    %224 = vmatpush1.bf16.msra.mxu0 0
    %225 = vmatprep.subr.bf16.mxu0 0
    %226 = vmatpush1.bf16.msra.mxu0 0
    %227 = vmatprep.mubr.bf16.mxu0 0
    %228 = vmatmul.mubr.bf16.gmra.mrb[0].mxu0 %v123
    %v229 = vpop.f32.mrb[0].mxu0
    %v230 = vadd.f32 0.0, %v229
    %v231 = vpop.f32.mrb[0].mxu0
    %v232 = vpop.f32.mrb[0].mxu0
    %v233 = vadd.f32 0.0, %v232
    %v234 = vpop.f32.mrb[0].mxu0
    %235 = vmatprep.mubr.bf16.mxu0 0
    %236 = vmatmul.mubr.bf16.gmra.mrb[0].mxu0 %v124
    %v237 = vpop.f32.mrb[0].mxu0
    %v238 = vadd.f32 0.0, %v237
    %v239 = vpop.f32.mrb[0].mxu0
    %v240 = vpop.f32.mrb[0].mxu0
    %v241 = vadd.f32 0.0, %v240
    %v242 = vpop.f32.mrb[0].mxu0
    %243 = vmatprep.mubr.bf16.mxu0 0
    %244 = vmatmul.mubr.bf16.gmra.mrb[0].mxu0 %v125
    %v245 = vpop.f32.mrb[0].mxu0
    %v246 = vadd.f32 0.0, %v245
    %v247 = vpop.f32.mrb[0].mxu0
    %v248 = vpop.f32.mrb[0].mxu0
    %v249 = vadd.f32 0.0, %v248
    %v250 = vpop.f32.mrb[0].mxu0
    %251 = vmatprep.mubr.bf16.mxu0 0
    %252 = vmatmul.mubr.bf16.gmra.mrb[0].mxu0 %v126
    %v253 = vpop.f32.mrb[0].mxu0
    %v254 = vadd.f32 0.0, %v253
    %v255 = vpop.f32.mrb[0].mxu0
    %v256 = vpop.f32.mrb[0].mxu0
    %v257 = vadd.f32 0.0, %v256
    %v258 = vpop.f32.mrb[0].mxu0
    %259 = vmatprep.mubr.bf16.mxu0 0
    %260 = vmatmul.mubr.bf16.gmra.mrb[0].mxu0 %v127
    %v261 = vpop.f32.mrb[0].mxu0
    %v262 = vadd.f32 0.0, %v261
    %v263 = vpop.f32.mrb[0].mxu0
    %v264 = vpop.f32.mrb[0].mxu0
    %v265 = vadd.f32 0.0, %v264
    %v266 = vpop.f32.mrb[0].mxu0
    %267 = vmatprep.mubr.bf16.mxu0 0
    %268 = vmatmul.mubr.bf16.gmra.mrb[0].mxu0 %v128
    %v269 = vpop.f32.mrb[0].mxu0
    %v270 = vadd.f32 0.0, %v269
    %v271 = vpop.f32.mrb[0].mxu0
    %v272 = vpop.f32.mrb[0].mxu0
    %v273 = vadd.f32 0.0, %v272
    %v274 = vpop.f32.mrb[0].mxu0
    %275 = vmatprep.mubr.bf16.mxu0 0
    %276 = vmatmul.mubr.bf16.gmra.mrb[0].mxu0 %v129
    %v277 = vpop.f32.mrb[0].mxu0
    %v278 = vadd.f32 0.0, %v277
    %v279 = vpop.f32.mrb[0].mxu0
    %v280 = vpop.f32.mrb[0].mxu0
    %v281 = vadd.f32 0.0, %v280
    %v282 = vpop.f32.mrb[0].mxu0
    %283 = vmatprep.mubr.bf16.mxu0 0
    %284 = vmatmul.mubr.bf16.gmra.mrb[0].mxu0 %v130
    %v285 = vpop.f32.mrb[0].mxu0
    %v286 = vadd.f32 0.0, %v285
    %v287 = vpop.f32.mrb[0].mxu0
    %v288 = vpop.f32.mrb[0].mxu0
    %v289 = vadd.f32 0.0, %v288
    %v290 = vpop.f32.mrb[0].mxu0
    %291 = vdwg.mxu0
    %v292 = vpack.c.bf16 %v233, %v230
    %v293 = vpack.c.bf16 %v241, %v238
    %v294 = vpack.c.bf16 %v249, %v246
    %v295 = vpack.c.bf16 %v257, %v254
    %v296 = vpack.c.bf16 %v265, %v262
    %v297 = vpack.c.bf16 %v273, %v270
    %v298 = vpack.c.bf16 %v281, %v278
    %v299 = vpack.c.bf16 %v289, %v286
    %v300 = vld [vmem:[#allocation7] sm:$0xf]
    %v301 = vld [vmem:[#allocation7 + $0x4] sm:$0xf]
    %v302 = vld [vmem:[#allocation7 + $0x8] sm:$0xf]
    %v303 = vld [vmem:[#allocation7 + $0xc] sm:$0xf]
    %v304 = vld [vmem:[#allocation7 + $0x10] sm:$0xf]
    %v305 = vld [vmem:[#allocation7 + $0x14] sm:$0xf]
    %v306 = vld [vmem:[#allocation7 + $0x18] sm:$0xf]
    %v307 = vld [vmem:[#allocation7 + $0x1c] sm:$0xf]
    %v308 = vld [vmem:[#allocation7 + $0x20] sm:$0xf]
    %v309 = vld [vmem:[#allocation7 + $0x24] sm:$0xf]
    %v310 = vld [vmem:[#allocation7 + $0x28] sm:$0xf]
    %v311 = vld [vmem:[#allocation7 + $0x2c] sm:$0xf]
    %v312 = vld [vmem:[#allocation7 + $0x30] sm:$0xf]
    %v313 = vld [vmem:[#allocation7 + $0x34] sm:$0xf]
    %v314 = vld [vmem:[#allocation7 + $0x38] sm:$0xf]
    %v315 = vld [vmem:[#allocation7 + $0x3c] sm:$0xf]
    %v316 = vld [vmem:[%s3] sm:$0x1]
    %v318 = vlaneseq
    %v319 = vshrl.u32 %v318, 7
    %v320 = vsub.s32 0, %v319
    %v321 = vrot.slane %v316, %v320
    %v339 = vunpack.c.l.b16 %v300
    %v340 = vunpack.c.l.b16 %v301
    %v341 = vunpack.c.l.b16 %v302
    %v342 = vunpack.c.l.b16 %v303
    %v343 = vunpack.c.l.b16 %v304
    %v344 = vunpack.c.l.b16 %v305
    %v345 = vunpack.c.l.b16 %v306
    %v346 = vunpack.c.l.b16 %v307
    %v347 = vunpack.c.l.b16 %v308
    %v348 = vunpack.c.l.b16 %v309
    %v349 = vunpack.c.l.b16 %v310
    %v350 = vunpack.c.l.b16 %v311
    %v351 = vunpack.c.l.b16 %v312
    %v352 = vunpack.c.l.b16 %v313
    %v353 = vunpack.c.l.b16 %v314
    %v354 = vunpack.c.l.b16 %v315
    %v355 = vpack.c.b16 %v340, %v339
    %v356 = vpack.c.b16 %v342, %v341
    %v357 = vpack.c.b16 %v344, %v343
    %v358 = vpack.c.b16 %v346, %v345
    %v359 = vpack.c.b16 %v348, %v347
    %v360 = vpack.c.b16 %v350, %v349
    %v361 = vpack.c.b16 %v352, %v351
    %v362 = vpack.c.b16 %v354, %v353
    %371 = vmatprep.subr.bf16.mxu0 0
    %372 = vmatpush1.bf16.msra.mxu0 %v355
    %373 = vmatprep.subr.bf16.mxu0 0
    %374 = vmatpush1.bf16.msra.mxu0 %v356
    %375 = vmatprep.subr.bf16.mxu0 0
    %376 = vmatpush1.bf16.msra.mxu0 %v357
    %377 = vmatprep.subr.bf16.mxu0 0
    %378 = vmatpush1.bf16.msra.mxu0 %v358
    %379 = vmatprep.subr.bf16.mxu0 0
    %380 = vmatpush1.bf16.msra.mxu0 %v359
    %381 = vmatprep.subr.bf16.mxu0 0
    %382 = vmatpush1.bf16.msra.mxu0 %v360
    %383 = vmatprep.subr.bf16.mxu0 0
    %384 = vmatpush1.bf16.msra.mxu0 %v361
    %385 = vmatprep.subr.bf16.mxu0 0
    %386 = vmatpush1.bf16.msra.mxu0 %v362
    %387 = vmatprep.subr.bf16.mxu0 0
    %388 = vmatpush1.bf16.msra.mxu0 0
    %389 = vmatprep.subr.bf16.mxu0 0
    %390 = vmatpush1.bf16.msra.mxu0 0
    %391 = vmatprep.subr.bf16.mxu0 0
    %392 = vmatpush1.bf16.msra.mxu0 0
    %393 = vmatprep.subr.bf16.mxu0 0
    %394 = vmatpush1.bf16.msra.mxu0 0
    %395 = vmatprep.subr.bf16.mxu0 0
    %396 = vmatpush1.bf16.msra.mxu0 0
    %397 = vmatprep.subr.bf16.mxu0 0
    %398 = vmatpush1.bf16.msra.mxu0 0
    %399 = vmatprep.subr.bf16.mxu0 0
    %400 = vmatpush1.bf16.msra.mxu0 0
    %401 = vmatprep.subr.bf16.mxu0 0
    %402 = vmatpush1.bf16.msra.mxu0 0
    %403 = vmatprep.mubr.bf16.mxu0 0
    %404 = vmatmul.mubr.bf16.gmra.mrb[0].mxu0 %v292
    %v405 = vpop.f32.mrb[0].mxu0
    %v406 = vadd.f32 %v321, %v405
    %v407 = vpop.f32.mrb[0].mxu0
    %v408 = vpop.f32.mrb[0].mxu0
    %v409 = vadd.f32 %v321, %v408
    %v410 = vpop.f32.mrb[0].mxu0
    %411 = vmatprep.mubr.bf16.mxu0 0
    %412 = vmatmul.mubr.bf16.gmra.mrb[0].mxu0 %v293
    %v413 = vpop.f32.mrb[0].mxu0
    %v414 = vadd.f32 %v321, %v413
    %v415 = vpop.f32.mrb[0].mxu0
    %v416 = vpop.f32.mrb[0].mxu0
    %v417 = vadd.f32 %v321, %v416
    %v418 = vpop.f32.mrb[0].mxu0
    %419 = vmatprep.mubr.bf16.mxu0 0
    %420 = vmatmul.mubr.bf16.gmra.mrb[0].mxu0 %v294
    %v421 = vpop.f32.mrb[0].mxu0
    %v422 = vadd.f32 %v321, %v421
    %v423 = vpop.f32.mrb[0].mxu0
    %v424 = vpop.f32.mrb[0].mxu0
    %v425 = vadd.f32 %v321, %v424
    %v426 = vpop.f32.mrb[0].mxu0
    %427 = vmatprep.mubr.bf16.mxu0 0
    %428 = vmatmul.mubr.bf16.gmra.mrb[0].mxu0 %v295
    %v429 = vpop.f32.mrb[0].mxu0
    %v430 = vadd.f32 %v321, %v429
    %v431 = vpop.f32.mrb[0].mxu0
    %v432 = vpop.f32.mrb[0].mxu0
    %v433 = vadd.f32 %v321, %v432
    %v434 = vpop.f32.mrb[0].mxu0
    %435 = vmatprep.mubr.bf16.mxu0 0
    %436 = vmatmul.mubr.bf16.gmra.mrb[0].mxu0 %v296
    %v437 = vpop.f32.mrb[0].mxu0
    %v438 = vadd.f32 %v321, %v437
    %v439 = vpop.f32.mrb[0].mxu0
    %v440 = vpop.f32.mrb[0].mxu0
    %v441 = vadd.f32 %v321, %v440
    %v442 = vpop.f32.mrb[0].mxu0
    %443 = vmatprep.mubr.bf16.mxu0 0
    %444 = vmatmul.mubr.bf16.gmra.mrb[0].mxu0 %v297
    %v445 = vpop.f32.mrb[0].mxu0
    %v446 = vadd.f32 %v321, %v445
    %v447 = vpop.f32.mrb[0].mxu0
    %v448 = vpop.f32.mrb[0].mxu0
    %v449 = vadd.f32 %v321, %v448
    %v450 = vpop.f32.mrb[0].mxu0
    %451 = vmatprep.mubr.bf16.mxu0 0
    %452 = vmatmul.mubr.bf16.gmra.mrb[0].mxu0 %v298
    %v453 = vpop.f32.mrb[0].mxu0
    %v454 = vadd.f32 %v321, %v453
    %v455 = vpop.f32.mrb[0].mxu0
    %v456 = vpop.f32.mrb[0].mxu0
    %v457 = vadd.f32 %v321, %v456
    %v458 = vpop.f32.mrb[0].mxu0
    %459 = vmatprep.mubr.bf16.mxu0 0
    %460 = vmatmul.mubr.bf16.gmra.mrb[0].mxu0 %v299
    %v461 = vpop.f32.mrb[0].mxu0
    %v462 = vadd.f32 %v321, %v461
    %v463 = vpop.f32.mrb[0].mxu0
    %v464 = vpop.f32.mrb[0].mxu0
    %v465 = vadd.f32 %v321, %v464
    %v466 = vpop.f32.mrb[0].mxu0
    %467 = vdwg.mxu0
    %v468 = vmax.f32 %v406, 0.0
    %v469 = vmax.f32 %v409, 0.0
    %v470 = vmax.f32 %v414, 0.0
    %v471 = vmax.f32 %v417, 0.0
    %v472 = vmax.f32 %v422, 0.0
    %v473 = vmax.f32 %v425, 0.0
    %v474 = vmax.f32 %v430, 0.0
    %v475 = vmax.f32 %v433, 0.0
    %v476 = vmax.f32 %v438, 0.0
    %v477 = vmax.f32 %v441, 0.0
    %v478 = vmax.f32 %v446, 0.0
    %v479 = vmax.f32 %v449, 0.0
    %v480 = vmax.f32 %v454, 0.0
    %v481 = vmax.f32 %v457, 0.0
    %v482 = vmax.f32 %v462, 0.0
    %v483 = vmax.f32 %v465, 0.0
    %v484 = vpack.c.bf16 %v469, %v468
    %v485 = vpack.c.bf16 %v471, %v470
    %v486 = vpack.c.bf16 %v473, %v472
    %v487 = vpack.c.bf16 %v475, %v474
    %v488 = vpack.c.bf16 %v477, %v476
    %v489 = vpack.c.bf16 %v479, %v478
    %v490 = vpack.c.bf16 %v481, %v480
    %v491 = vpack.c.bf16 %v483, %v482
    %v492 = vld [vmem:[#allocation8] sm:$0xf]
    %v493 = vld [vmem:[#allocation8 + $0x4] sm:$0xf]
    %v494 = vld [vmem:[#allocation8 + $0x8] sm:$0xf]
    %v495 = vld [vmem:[#allocation8 + $0xc] sm:$0xf]
    %v496 = vld [vmem:[#allocation8 + $0x10] sm:$0xf]
    %v497 = vld [vmem:[#allocation8 + $0x14] sm:$0xf]
    %v498 = vld [vmem:[#allocation8 + $0x18] sm:$0xf]
    %v499 = vld [vmem:[#allocation8 + $0x1c] sm:$0xf]
    %v500 = vld [vmem:[#allocation8 + $0x20] sm:$0xf]
    %v501 = vld [vmem:[#allocation8 + $0x24] sm:$0xf]
    %v502 = vld [vmem:[#allocation8 + $0x28] sm:$0xf]
    %v503 = vld [vmem:[#allocation8 + $0x2c] sm:$0xf]
    %v504 = vld [vmem:[#allocation8 + $0x30] sm:$0xf]
    %v505 = vld [vmem:[#allocation8 + $0x34] sm:$0xf]
    %v506 = vld [vmem:[#allocation8 + $0x38] sm:$0xf]
    %v507 = vld [vmem:[#allocation8 + $0x3c] sm:$0xf]
    %v508 = vld [vmem:[%s5] sm:$0x1]
    %v510 = vlaneseq
    %v511 = vshrl.u32 %v510, 7
    %v512 = vsub.s32 0, %v511
    %v513 = vrot.slane %v508, %v512
    %v531 = vunpack.c.l.b16 %v492
    %v532 = vunpack.c.l.b16 %v493
    %v533 = vunpack.c.l.b16 %v494
    %v534 = vunpack.c.l.b16 %v495
    %v535 = vunpack.c.l.b16 %v496
    %v536 = vunpack.c.l.b16 %v497
    %v537 = vunpack.c.l.b16 %v498
    %v538 = vunpack.c.l.b16 %v499
    %v539 = vunpack.c.l.b16 %v500
    %v540 = vunpack.c.l.b16 %v501
    %v541 = vunpack.c.l.b16 %v502
    %v542 = vunpack.c.l.b16 %v503
    %v543 = vunpack.c.l.b16 %v504
    %v544 = vunpack.c.l.b16 %v505
    %v545 = vunpack.c.l.b16 %v506
    %v546 = vunpack.c.l.b16 %v507
    %v547 = vpack.c.b16 %v532, %v531
    %v548 = vpack.c.b16 %v534, %v533
    %v549 = vpack.c.b16 %v536, %v535
    %v550 = vpack.c.b16 %v538, %v537
    %v551 = vpack.c.b16 %v540, %v539
    %v552 = vpack.c.b16 %v542, %v541
    %v553 = vpack.c.b16 %v544, %v543
    %v554 = vpack.c.b16 %v546, %v545
    %563 = vmatprep.subr.bf16.mxu0 0
    %564 = vmatpush1.bf16.msra.mxu0 %v547
    %565 = vmatprep.subr.bf16.mxu0 0
    %566 = vmatpush1.bf16.msra.mxu0 %v548
    %567 = vmatprep.subr.bf16.mxu0 0
    %568 = vmatpush1.bf16.msra.mxu0 %v549
    %569 = vmatprep.subr.bf16.mxu0 0
    %570 = vmatpush1.bf16.msra.mxu0 %v550
    %571 = vmatprep.subr.bf16.mxu0 0
    %572 = vmatpush1.bf16.msra.mxu0 %v551
    %573 = vmatprep.subr.bf16.mxu0 0
    %574 = vmatpush1.bf16.msra.mxu0 %v552
    %575 = vmatprep.subr.bf16.mxu0 0
    %576 = vmatpush1.bf16.msra.mxu0 %v553
    %577 = vmatprep.subr.bf16.mxu0 0
    %578 = vmatpush1.bf16.msra.mxu0 %v554
    %579 = vmatprep.subr.bf16.mxu0 0
    %580 = vmatpush1.bf16.msra.mxu0 0
    %581 = vmatprep.subr.bf16.mxu0 0
    %582 = vmatpush1.bf16.msra.mxu0 0
    %583 = vmatprep.subr.bf16.mxu0 0
    %584 = vmatpush1.bf16.msra.mxu0 0
    %585 = vmatprep.subr.bf16.mxu0 0
    %586 = vmatpush1.bf16.msra.mxu0 0
    %587 = vmatprep.subr.bf16.mxu0 0
    %588 = vmatpush1.bf16.msra.mxu0 0
    %589 = vmatprep.subr.bf16.mxu0 0
    %590 = vmatpush1.bf16.msra.mxu0 0
    %591 = vmatprep.subr.bf16.mxu0 0
    %592 = vmatpush1.bf16.msra.mxu0 0
    %593 = vmatprep.subr.bf16.mxu0 0
    %594 = vmatpush1.bf16.msra.mxu0 0
    %595 = vmatprep.mubr.bf16.mxu0 0
    %596 = vmatmul.mubr.bf16.gmra.mrb[0].mxu0 %v484
    %v597 = vpop.f32.mrb[0].mxu0
    %v598 = vadd.f32 %v513, %v597
    %v599 = vpop.f32.mrb[0].mxu0
    %v600 = vpop.f32.mrb[0].mxu0
    %v601 = vadd.f32 %v513, %v600
    %v602 = vpop.f32.mrb[0].mxu0
    %603 = vmatprep.mubr.bf16.mxu0 0
    %604 = vmatmul.mubr.bf16.gmra.mrb[0].mxu0 %v485
    %v605 = vpop.f32.mrb[0].mxu0
    %v606 = vadd.f32 %v513, %v605
    %v607 = vpop.f32.mrb[0].mxu0
    %v608 = vpop.f32.mrb[0].mxu0
    %v609 = vadd.f32 %v513, %v608
    %v610 = vpop.f32.mrb[0].mxu0
    %611 = vmatprep.mubr.bf16.mxu0 0
    %612 = vmatmul.mubr.bf16.gmra.mrb[0].mxu0 %v486
    %v613 = vpop.f32.mrb[0].mxu0
    %v614 = vadd.f32 %v513, %v613
    %v615 = vpop.f32.mrb[0].mxu0
    %v616 = vpop.f32.mrb[0].mxu0
    %v617 = vadd.f32 %v513, %v616
    %v618 = vpop.f32.mrb[0].mxu0
    %619 = vmatprep.mubr.bf16.mxu0 0
    %620 = vmatmul.mubr.bf16.gmra.mrb[0].mxu0 %v487
    %v621 = vpop.f32.mrb[0].mxu0
    %v622 = vadd.f32 %v513, %v621
    %v623 = vpop.f32.mrb[0].mxu0
    %v624 = vpop.f32.mrb[0].mxu0
    %v625 = vadd.f32 %v513, %v624
    %v626 = vpop.f32.mrb[0].mxu0
    %627 = vmatprep.mubr.bf16.mxu0 0
    %628 = vmatmul.mubr.bf16.gmra.mrb[0].mxu0 %v488
    %v629 = vpop.f32.mrb[0].mxu0
    %v630 = vadd.f32 %v513, %v629
    %v631 = vpop.f32.mrb[0].mxu0
    %v632 = vpop.f32.mrb[0].mxu0
    %v633 = vadd.f32 %v513, %v632
    %v634 = vpop.f32.mrb[0].mxu0
    %635 = vmatprep.mubr.bf16.mxu0 0
    %636 = vmatmul.mubr.bf16.gmra.mrb[0].mxu0 %v489
    %v637 = vpop.f32.mrb[0].mxu0
    %v638 = vadd.f32 %v513, %v637
    %v639 = vpop.f32.mrb[0].mxu0
    %v640 = vpop.f32.mrb[0].mxu0
    %v641 = vadd.f32 %v513, %v640
    %v642 = vpop.f32.mrb[0].mxu0
    %643 = vmatprep.mubr.bf16.mxu0 0
    %644 = vmatmul.mubr.bf16.gmra.mrb[0].mxu0 %v490
    %v645 = vpop.f32.mrb[0].mxu0
    %v646 = vadd.f32 %v513, %v645
    %v647 = vpop.f32.mrb[0].mxu0
    %v648 = vpop.f32.mrb[0].mxu0
    %v649 = vadd.f32 %v513, %v648
    %v650 = vpop.f32.mrb[0].mxu0
    %651 = vmatprep.mubr.bf16.mxu0 0
    %652 = vmatmul.mubr.bf16.gmra.mrb[0].mxu0 %v491
    %v653 = vpop.f32.mrb[0].mxu0
    %v654 = vadd.f32 %v513, %v653
    %v655 = vpop.f32.mrb[0].mxu0
    %v656 = vpop.f32.mrb[0].mxu0
    %v657 = vadd.f32 %v513, %v656
    %v658 = vpop.f32.mrb[0].mxu0
    %659 = vdwg.mxu0
    %v660 = vmax.f32 %v598, 0.0
    %v661 = vmax.f32 %v601, 0.0
    %v662 = vmax.f32 %v606, 0.0
    %v663 = vmax.f32 %v609, 0.0
    %v664 = vmax.f32 %v614, 0.0
    %v665 = vmax.f32 %v617, 0.0
    %v666 = vmax.f32 %v622, 0.0
    %v667 = vmax.f32 %v625, 0.0
    %v668 = vmax.f32 %v630, 0.0
    %v669 = vmax.f32 %v633, 0.0
    %v670 = vmax.f32 %v638, 0.0
    %v671 = vmax.f32 %v641, 0.0
    %v672 = vmax.f32 %v646, 0.0
    %v673 = vmax.f32 %v649, 0.0
    %v674 = vmax.f32 %v654, 0.0
    %v675 = vmax.f32 %v657, 0.0
    %v676 = vpack.c.bf16 %v661, %v660
    %v677 = vpack.c.bf16 %v663, %v662
    %v678 = vpack.c.bf16 %v665, %v664
    %v679 = vpack.c.bf16 %v667, %v666
    %v680 = vpack.c.bf16 %v669, %v668
    %v681 = vpack.c.bf16 %v671, %v670
    %v682 = vpack.c.bf16 %v673, %v672
    %v683 = vpack.c.bf16 %v675, %v674
    %684 = vmatprep.subr.bf16.mxu0 0
    %685 = vmatpush1.bf16.msra.mxu0 %v676
    %686 = vmatprep.subr.bf16.mxu0 0
    %687 = vmatpush1.bf16.msra.mxu0 %v677
    %688 = vmatprep.subr.bf16.mxu0 0
    %689 = vmatpush1.bf16.msra.mxu0 %v678
    %690 = vmatprep.subr.bf16.mxu0 0
    %691 = vmatpush1.bf16.msra.mxu0 %v679
    %692 = vmatprep.subr.bf16.mxu0 0
    %693 = vmatpush1.bf16.msra.mxu0 %v680
    %694 = vmatprep.subr.bf16.mxu0 0
    %695 = vmatpush1.bf16.msra.mxu0 %v681
    %696 = vmatprep.subr.bf16.mxu0 0
    %697 = vmatpush1.bf16.msra.mxu0 %v682
    %698 = vmatprep.subr.bf16.mxu0 0
    %699 = vmatpush1.bf16.msra.mxu0 %v683
    %700 = vmatprep.subr.bf16.mxu0 0
    %701 = vmatpush1.bf16.msra.mxu0 0
    %702 = vmatprep.subr.bf16.mxu0 0
    %703 = vmatpush1.bf16.msra.mxu0 0
    %704 = vmatprep.subr.bf16.mxu0 0
    %705 = vmatpush1.bf16.msra.mxu0 0
    %706 = vmatprep.subr.bf16.mxu0 0
    %707 = vmatpush1.bf16.msra.mxu0 0
    %708 = vmatprep.subr.bf16.mxu0 0
    %709 = vmatpush1.bf16.msra.mxu0 0
    %710 = vmatprep.subr.bf16.mxu0 0
    %711 = vmatpush1.bf16.msra.mxu0 0
    %712 = vmatprep.subr.bf16.mxu0 0
    %713 = vmatpush1.bf16.msra.mxu0 0
    %714 = vmatprep.subr.bf16.mxu0 0
    %715 = vmatpush1.bf16.msra.mxu0 0
    %716 = vmatprep.mubr.bf16.mxu0 0
    %717 = vmatmul.mubr.bf16.gmra.mrb[0].mxu0 %v123
    %v718 = vpop.f32.mrb[0].mxu0
    %v719 = vadd.f32 0.0, %v718
    %v720 = vpop.f32.mrb[0].mxu0
    %v721 = vpop.f32.mrb[0].mxu0
    %v722 = vadd.f32 0.0, %v721
    %v723 = vpop.f32.mrb[0].mxu0
    %724 = vmatprep.mubr.bf16.mxu0 0
    %725 = vmatmul.mubr.bf16.gmra.mrb[0].mxu0 %v124
    %v726 = vpop.f32.mrb[0].mxu0
    %v727 = vadd.f32 0.0, %v726
    %v728 = vpop.f32.mrb[0].mxu0
    %v729 = vpop.f32.mrb[0].mxu0
    %v730 = vadd.f32 0.0, %v729
    %v731 = vpop.f32.mrb[0].mxu0
    %732 = vmatprep.mubr.bf16.mxu0 0
    %733 = vmatmul.mubr.bf16.gmra.mrb[0].mxu0 %v125
    %v734 = vpop.f32.mrb[0].mxu0
    %v735 = vadd.f32 0.0, %v734
    %v736 = vpop.f32.mrb[0].mxu0
    %v737 = vpop.f32.mrb[0].mxu0
    %v738 = vadd.f32 0.0, %v737
    %v739 = vpop.f32.mrb[0].mxu0
    %740 = vmatprep.mubr.bf16.mxu0 0
    %741 = vmatmul.mubr.bf16.gmra.mrb[0].mxu0 %v126
    %v742 = vpop.f32.mrb[0].mxu0
    %v743 = vadd.f32 0.0, %v742
    %v744 = vpop.f32.mrb[0].mxu0
    %v745 = vpop.f32.mrb[0].mxu0
    %v746 = vadd.f32 0.0, %v745
    %v747 = vpop.f32.mrb[0].mxu0
    %748 = vmatprep.mubr.bf16.mxu0 0
    %749 = vmatmul.mubr.bf16.gmra.mrb[0].mxu0 %v127
    %v750 = vpop.f32.mrb[0].mxu0
    %v751 = vadd.f32 0.0, %v750
    %v752 = vpop.f32.mrb[0].mxu0
    %v753 = vpop.f32.mrb[0].mxu0
    %v754 = vadd.f32 0.0, %v753
    %v755 = vpop.f32.mrb[0].mxu0
    %756 = vmatprep.mubr.bf16.mxu0 0
    %757 = vmatmul.mubr.bf16.gmra.mrb[0].mxu0 %v128
    %v758 = vpop.f32.mrb[0].mxu0
    %v759 = vadd.f32 0.0, %v758
    %v760 = vpop.f32.mrb[0].mxu0
    %v761 = vpop.f32.mrb[0].mxu0
    %v762 = vadd.f32 0.0, %v761
    %v763 = vpop.f32.mrb[0].mxu0
    %764 = vmatprep.mubr.bf16.mxu0 0
    %765 = vmatmul.mubr.bf16.gmra.mrb[0].mxu0 %v129
    %v766 = vpop.f32.mrb[0].mxu0
    %v767 = vadd.f32 0.0, %v766
    %v768 = vpop.f32.mrb[0].mxu0
    %v769 = vpop.f32.mrb[0].mxu0
    %v770 = vadd.f32 0.0, %v769
    %v771 = vpop.f32.mrb[0].mxu0
    %772 = vmatprep.mubr.bf16.mxu0 0
    %773 = vmatmul.mubr.bf16.gmra.mrb[0].mxu0 %v130
    %v774 = vpop.f32.mrb[0].mxu0
    %v775 = vadd.f32 0.0, %v774
    %v776 = vpop.f32.mrb[0].mxu0
    %v777 = vpop.f32.mrb[0].mxu0
    %v778 = vadd.f32 0.0, %v777
    %v779 = vpop.f32.mrb[0].mxu0
    %780 = vdwg.mxu0
    %v781 = vpack.c.bf16 %v722, %v719
    %v782 = vpack.c.bf16 %v730, %v727
    %v783 = vpack.c.bf16 %v738, %v735
    %v784 = vpack.c.bf16 %v746, %v743
    %v785 = vpack.c.bf16 %v754, %v751
    %v786 = vpack.c.bf16 %v762, %v759
    %v787 = vpack.c.bf16 %v770, %v767
    %v788 = vpack.c.bf16 %v778, %v775
    %v789 = vld [vmem:[#allocation10] sm:$0xf]
    %v790 = vld [vmem:[#allocation10 + $0x4] sm:$0xf]
    %v791 = vld [vmem:[#allocation10 + $0x8] sm:$0xf]
    %v792 = vld [vmem:[#allocation10 + $0xc] sm:$0xf]
    %v793 = vld [vmem:[#allocation10 + $0x10] sm:$0xf]
    %v794 = vld [vmem:[#allocation10 + $0x14] sm:$0xf]
    %v795 = vld [vmem:[#allocation10 + $0x18] sm:$0xf]
    %v796 = vld [vmem:[#allocation10 + $0x1c] sm:$0xf]
    %v797 = vld [vmem:[#allocation10 + $0x20] sm:$0xf]
    %v798 = vld [vmem:[#allocation10 + $0x24] sm:$0xf]
    %v799 = vld [vmem:[#allocation10 + $0x28] sm:$0xf]
    %v800 = vld [vmem:[#allocation10 + $0x2c] sm:$0xf]
    %v801 = vld [vmem:[#allocation10 + $0x30] sm:$0xf]
    %v802 = vld [vmem:[#allocation10 + $0x34] sm:$0xf]
    %v803 = vld [vmem:[#allocation10 + $0x38] sm:$0xf]
    %v804 = vld [vmem:[#allocation10 + $0x3c] sm:$0xf]
    %v805 = vld [vmem:[%s7] sm:$0x1]
    %v807 = vlaneseq
    %v808 = vshrl.u32 %v807, 7
    %v809 = vsub.s32 0, %v808
    %v810 = vrot.slane %v805, %v809
    %v828 = vunpack.c.l.b16 %v789
    %v829 = vunpack.c.l.b16 %v790
    %v830 = vunpack.c.l.b16 %v791
    %v831 = vunpack.c.l.b16 %v792
    %v832 = vunpack.c.l.b16 %v793
    %v833 = vunpack.c.l.b16 %v794
    %v834 = vunpack.c.l.b16 %v795
    %v835 = vunpack.c.l.b16 %v796
    %v836 = vunpack.c.l.b16 %v797
    %v837 = vunpack.c.l.b16 %v798
    %v838 = vunpack.c.l.b16 %v799
    %v839 = vunpack.c.l.b16 %v800
    %v840 = vunpack.c.l.b16 %v801
    %v841 = vunpack.c.l.b16 %v802
    %v842 = vunpack.c.l.b16 %v803
    %v843 = vunpack.c.l.b16 %v804
    %v844 = vpack.c.b16 %v829, %v828
    %v845 = vpack.c.b16 %v831, %v830
    %v846 = vpack.c.b16 %v833, %v832
    %v847 = vpack.c.b16 %v835, %v834
    %v848 = vpack.c.b16 %v837, %v836
    %v849 = vpack.c.b16 %v839, %v838
    %v850 = vpack.c.b16 %v841, %v840
    %v851 = vpack.c.b16 %v843, %v842
    %860 = vmatprep.subr.bf16.mxu0 0
    %861 = vmatpush1.bf16.msra.mxu0 %v844
    %862 = vmatprep.subr.bf16.mxu0 0
    %863 = vmatpush1.bf16.msra.mxu0 %v845
    %864 = vmatprep.subr.bf16.mxu0 0
    %865 = vmatpush1.bf16.msra.mxu0 %v846
    %866 = vmatprep.subr.bf16.mxu0 0
    %867 = vmatpush1.bf16.msra.mxu0 %v847
    %868 = vmatprep.subr.bf16.mxu0 0
    %869 = vmatpush1.bf16.msra.mxu0 %v848
    %870 = vmatprep.subr.bf16.mxu0 0
    %871 = vmatpush1.bf16.msra.mxu0 %v849
    %872 = vmatprep.subr.bf16.mxu0 0
    %873 = vmatpush1.bf16.msra.mxu0 %v850
    %874 = vmatprep.subr.bf16.mxu0 0
    %875 = vmatpush1.bf16.msra.mxu0 %v851
    %876 = vmatprep.subr.bf16.mxu0 0
    %877 = vmatpush1.bf16.msra.mxu0 0
    %878 = vmatprep.subr.bf16.mxu0 0
    %879 = vmatpush1.bf16.msra.mxu0 0
    %880 = vmatprep.subr.bf16.mxu0 0
    %881 = vmatpush1.bf16.msra.mxu0 0
    %882 = vmatprep.subr.bf16.mxu0 0
    %883 = vmatpush1.bf16.msra.mxu0 0
    %884 = vmatprep.subr.bf16.mxu0 0
    %885 = vmatpush1.bf16.msra.mxu0 0
    %886 = vmatprep.subr.bf16.mxu0 0
    %887 = vmatpush1.bf16.msra.mxu0 0
    %888 = vmatprep.subr.bf16.mxu0 0
    %889 = vmatpush1.bf16.msra.mxu0 0
    %890 = vmatprep.subr.bf16.mxu0 0
    %891 = vmatpush1.bf16.msra.mxu0 0
    %892 = vmatprep.mubr.bf16.mxu0 0
    %893 = vmatmul.mubr.bf16.gmra.mrb[0].mxu0 %v781
    %v894 = vpop.f32.mrb[0].mxu0
    %v895 = vadd.f32 %v810, %v894
    %v896 = vpop.f32.mrb[0].mxu0
    %v897 = vpop.f32.mrb[0].mxu0
    %v898 = vadd.f32 %v810, %v897
    %v899 = vpop.f32.mrb[0].mxu0
    %900 = vmatprep.mubr.bf16.mxu0 0
    %901 = vmatmul.mubr.bf16.gmra.mrb[0].mxu0 %v782
    %v902 = vpop.f32.mrb[0].mxu0
    %v903 = vadd.f32 %v810, %v902
    %v904 = vpop.f32.mrb[0].mxu0
    %v905 = vpop.f32.mrb[0].mxu0
    %v906 = vadd.f32 %v810, %v905
    %v907 = vpop.f32.mrb[0].mxu0
    %908 = vmatprep.mubr.bf16.mxu0 0
    %909 = vmatmul.mubr.bf16.gmra.mrb[0].mxu0 %v783
    %v910 = vpop.f32.mrb[0].mxu0
    %v911 = vadd.f32 %v810, %v910
    %v912 = vpop.f32.mrb[0].mxu0
    %v913 = vpop.f32.mrb[0].mxu0
    %v914 = vadd.f32 %v810, %v913
    %v915 = vpop.f32.mrb[0].mxu0
    %916 = vmatprep.mubr.bf16.mxu0 0
    %917 = vmatmul.mubr.bf16.gmra.mrb[0].mxu0 %v784
    %v918 = vpop.f32.mrb[0].mxu0
    %v919 = vadd.f32 %v810, %v918
    %v920 = vpop.f32.mrb[0].mxu0
    %v921 = vpop.f32.mrb[0].mxu0
    %v922 = vadd.f32 %v810, %v921
    %v923 = vpop.f32.mrb[0].mxu0
    %924 = vmatprep.mubr.bf16.mxu0 0
    %925 = vmatmul.mubr.bf16.gmra.mrb[0].mxu0 %v785
    %v926 = vpop.f32.mrb[0].mxu0
    %v927 = vadd.f32 %v810, %v926
    %v928 = vpop.f32.mrb[0].mxu0
    %v929 = vpop.f32.mrb[0].mxu0
    %v930 = vadd.f32 %v810, %v929
    %v931 = vpop.f32.mrb[0].mxu0
    %932 = vmatprep.mubr.bf16.mxu0 0
    %933 = vmatmul.mubr.bf16.gmra.mrb[0].mxu0 %v786
    %v934 = vpop.f32.mrb[0].mxu0
    %v935 = vadd.f32 %v810, %v934
    %v936 = vpop.f32.mrb[0].mxu0
    %v937 = vpop.f32.mrb[0].mxu0
    %v938 = vadd.f32 %v810, %v937
    %v939 = vpop.f32.mrb[0].mxu0
    %940 = vmatprep.mubr.bf16.mxu0 0
    %941 = vmatmul.mubr.bf16.gmra.mrb[0].mxu0 %v787
    %v942 = vpop.f32.mrb[0].mxu0
    %v943 = vadd.f32 %v810, %v942
    %v944 = vpop.f32.mrb[0].mxu0
    %v945 = vpop.f32.mrb[0].mxu0
    %v946 = vadd.f32 %v810, %v945
    %v947 = vpop.f32.mrb[0].mxu0
    %948 = vmatprep.mubr.bf16.mxu0 0
    %949 = vmatmul.mubr.bf16.gmra.mrb[0].mxu0 %v788
    %v950 = vpop.f32.mrb[0].mxu0
    %v951 = vadd.f32 %v810, %v950
    %v952 = vpop.f32.mrb[0].mxu0
    %v953 = vpop.f32.mrb[0].mxu0
    %v954 = vadd.f32 %v810, %v953
    %v955 = vpop.f32.mrb[0].mxu0
    %956 = vdwg.mxu0
    %v957 = vmax.f32 %v895, 0.0
    %v958 = vmax.f32 %v898, 0.0
    %v959 = vmax.f32 %v903, 0.0
    %v960 = vmax.f32 %v906, 0.0
    %v961 = vmax.f32 %v911, 0.0
    %v962 = vmax.f32 %v914, 0.0
    %v963 = vmax.f32 %v919, 0.0
    %v964 = vmax.f32 %v922, 0.0
    %v965 = vmax.f32 %v927, 0.0
    %v966 = vmax.f32 %v930, 0.0
    %v967 = vmax.f32 %v935, 0.0
    %v968 = vmax.f32 %v938, 0.0
    %v969 = vmax.f32 %v943, 0.0
    %v970 = vmax.f32 %v946, 0.0
    %v971 = vmax.f32 %v951, 0.0
    %v972 = vmax.f32 %v954, 0.0
    %v973 = vpack.c.bf16 %v958, %v957
    %v974 = vpack.c.bf16 %v960, %v959
    %v975 = vpack.c.bf16 %v962, %v961
    %v976 = vpack.c.bf16 %v964, %v963
    %v977 = vpack.c.bf16 %v966, %v965
    %v978 = vpack.c.bf16 %v968, %v967
    %v979 = vpack.c.bf16 %v970, %v969
    %v980 = vpack.c.bf16 %v972, %v971
    %v981 = vld [vmem:[#allocation11] sm:$0xf]
    %v982 = vld [vmem:[#allocation11 + $0x4] sm:$0xf]
    %v983 = vld [vmem:[#allocation11 + $0x8] sm:$0xf]
    %v984 = vld [vmem:[#allocation11 + $0xc] sm:$0xf]
    %v985 = vld [vmem:[#allocation11 + $0x10] sm:$0xf]
    %v986 = vld [vmem:[#allocation11 + $0x14] sm:$0xf]
    %v987 = vld [vmem:[#allocation11 + $0x18] sm:$0xf]
    %v988 = vld [vmem:[#allocation11 + $0x1c] sm:$0xf]
    %v989 = vld [vmem:[#allocation11 + $0x20] sm:$0xf]
    %v990 = vld [vmem:[#allocation11 + $0x24] sm:$0xf]
    %v991 = vld [vmem:[#allocation11 + $0x28] sm:$0xf]
    %v992 = vld [vmem:[#allocation11 + $0x2c] sm:$0xf]
    %v993 = vld [vmem:[#allocation11 + $0x30] sm:$0xf]
    %v994 = vld [vmem:[#allocation11 + $0x34] sm:$0xf]
    %v995 = vld [vmem:[#allocation11 + $0x38] sm:$0xf]
    %v996 = vld [vmem:[#allocation11 + $0x3c] sm:$0xf]
    %v997 = vld [vmem:[%s9] sm:$0x1]
    %v999 = vlaneseq
    %v1000 = vshrl.u32 %v999, 7
    %v1001 = vsub.s32 0, %v1000
    %v1002 = vrot.slane %v997, %v1001
    %v1020 = vunpack.c.l.b16 %v981
    %v1021 = vunpack.c.l.b16 %v982
    %v1022 = vunpack.c.l.b16 %v983
    %v1023 = vunpack.c.l.b16 %v984
    %v1024 = vunpack.c.l.b16 %v985
    %v1025 = vunpack.c.l.b16 %v986
    %v1026 = vunpack.c.l.b16 %v987
    %v1027 = vunpack.c.l.b16 %v988
    %v1028 = vunpack.c.l.b16 %v989
    %v1029 = vunpack.c.l.b16 %v990
    %v1030 = vunpack.c.l.b16 %v991
    %v1031 = vunpack.c.l.b16 %v992
    %v1032 = vunpack.c.l.b16 %v993
    %v1033 = vunpack.c.l.b16 %v994
    %v1034 = vunpack.c.l.b16 %v995
    %v1035 = vunpack.c.l.b16 %v996
    %v1036 = vpack.c.b16 %v1021, %v1020
    %v1037 = vpack.c.b16 %v1023, %v1022
    %v1038 = vpack.c.b16 %v1025, %v1024
    %v1039 = vpack.c.b16 %v1027, %v1026
    %v1040 = vpack.c.b16 %v1029, %v1028
    %v1041 = vpack.c.b16 %v1031, %v1030
    %v1042 = vpack.c.b16 %v1033, %v1032
    %v1043 = vpack.c.b16 %v1035, %v1034
    %1052 = vmatprep.subr.bf16.mxu0 0
    %1053 = vmatpush1.bf16.msra.mxu0 %v1036
    %1054 = vmatprep.subr.bf16.mxu0 0
    %1055 = vmatpush1.bf16.msra.mxu0 %v1037
    %1056 = vmatprep.subr.bf16.mxu0 0
    %1057 = vmatpush1.bf16.msra.mxu0 %v1038
    %1058 = vmatprep.subr.bf16.mxu0 0
    %1059 = vmatpush1.bf16.msra.mxu0 %v1039
    %1060 = vmatprep.subr.bf16.mxu0 0
    %1061 = vmatpush1.bf16.msra.mxu0 %v1040
    %1062 = vmatprep.subr.bf16.mxu0 0
    %1063 = vmatpush1.bf16.msra.mxu0 %v1041
    %1064 = vmatprep.subr.bf16.mxu0 0
    %1065 = vmatpush1.bf16.msra.mxu0 %v1042
    %1066 = vmatprep.subr.bf16.mxu0 0
    %1067 = vmatpush1.bf16.msra.mxu0 %v1043
    %1068 = vmatprep.subr.bf16.mxu0 0
    %1069 = vmatpush1.bf16.msra.mxu0 0
    %1070 = vmatprep.subr.bf16.mxu0 0
    %1071 = vmatpush1.bf16.msra.mxu0 0
    %1072 = vmatprep.subr.bf16.mxu0 0
    %1073 = vmatpush1.bf16.msra.mxu0 0
    %1074 = vmatprep.subr.bf16.mxu0 0
    %1075 = vmatpush1.bf16.msra.mxu0 0
    %1076 = vmatprep.subr.bf16.mxu0 0
    %1077 = vmatpush1.bf16.msra.mxu0 0
    %1078 = vmatprep.subr.bf16.mxu0 0
    %1079 = vmatpush1.bf16.msra.mxu0 0
    %1080 = vmatprep.subr.bf16.mxu0 0
    %1081 = vmatpush1.bf16.msra.mxu0 0
    %1082 = vmatprep.subr.bf16.mxu0 0
    %1083 = vmatpush1.bf16.msra.mxu0 0
    %1084 = vmatprep.mubr.bf16.mxu0 0
    %1085 = vmatmul.mubr.bf16.gmra.mrb[0].mxu0 %v973
    %v1086 = vpop.f32.mrb[0].mxu0
    %v1087 = vadd.f32 %v1002, %v1086
    %v1088 = vpop.f32.mrb[0].mxu0
    %v1089 = vpop.f32.mrb[0].mxu0
    %v1090 = vadd.f32 %v1002, %v1089
    %v1091 = vpop.f32.mrb[0].mxu0
    %1092 = vmatprep.mubr.bf16.mxu0 0
    %1093 = vmatmul.mubr.bf16.gmra.mrb[0].mxu0 %v974
    %v1094 = vpop.f32.mrb[0].mxu0
    %v1095 = vadd.f32 %v1002, %v1094
    %v1096 = vpop.f32.mrb[0].mxu0
    %v1097 = vpop.f32.mrb[0].mxu0
    %v1098 = vadd.f32 %v1002, %v1097
    %v1099 = vpop.f32.mrb[0].mxu0
    %1100 = vmatprep.mubr.bf16.mxu0 0
    %1101 = vmatmul.mubr.bf16.gmra.mrb[0].mxu0 %v975
    %v1102 = vpop.f32.mrb[0].mxu0
    %v1103 = vadd.f32 %v1002, %v1102
    %v1104 = vpop.f32.mrb[0].mxu0
    %v1105 = vpop.f32.mrb[0].mxu0
    %v1106 = vadd.f32 %v1002, %v1105
    %v1107 = vpop.f32.mrb[0].mxu0
    %1108 = vmatprep.mubr.bf16.mxu0 0
    %1109 = vmatmul.mubr.bf16.gmra.mrb[0].mxu0 %v976
    %v1110 = vpop.f32.mrb[0].mxu0
    %v1111 = vadd.f32 %v1002, %v1110
    %v1112 = vpop.f32.mrb[0].mxu0
    %v1113 = vpop.f32.mrb[0].mxu0
    %v1114 = vadd.f32 %v1002, %v1113
    %v1115 = vpop.f32.mrb[0].mxu0
    %1116 = vmatprep.mubr.bf16.mxu0 0
    %1117 = vmatmul.mubr.bf16.gmra.mrb[0].mxu0 %v977
    %v1118 = vpop.f32.mrb[0].mxu0
    %v1119 = vadd.f32 %v1002, %v1118
    %v1120 = vpop.f32.mrb[0].mxu0
    %v1121 = vpop.f32.mrb[0].mxu0
    %v1122 = vadd.f32 %v1002, %v1121
    %v1123 = vpop.f32.mrb[0].mxu0
    %1124 = vmatprep.mubr.bf16.mxu0 0
    %1125 = vmatmul.mubr.bf16.gmra.mrb[0].mxu0 %v978
    %v1126 = vpop.f32.mrb[0].mxu0
    %v1127 = vadd.f32 %v1002, %v1126
    %v1128 = vpop.f32.mrb[0].mxu0
    %v1129 = vpop.f32.mrb[0].mxu0
    %v1130 = vadd.f32 %v1002, %v1129
    %v1131 = vpop.f32.mrb[0].mxu0
    %1132 = vmatprep.mubr.bf16.mxu0 0
    %1133 = vmatmul.mubr.bf16.gmra.mrb[0].mxu0 %v979
    %v1134 = vpop.f32.mrb[0].mxu0
    %v1135 = vadd.f32 %v1002, %v1134
    %v1136 = vpop.f32.mrb[0].mxu0
    %v1137 = vpop.f32.mrb[0].mxu0
    %v1138 = vadd.f32 %v1002, %v1137
    %v1139 = vpop.f32.mrb[0].mxu0
    %1140 = vmatprep.mubr.bf16.mxu0 0
    %1141 = vmatmul.mubr.bf16.gmra.mrb[0].mxu0 %v980
    %v1142 = vpop.f32.mrb[0].mxu0
    %v1143 = vadd.f32 %v1002, %v1142
    %v1144 = vpop.f32.mrb[0].mxu0
    %v1145 = vpop.f32.mrb[0].mxu0
    %v1146 = vadd.f32 %v1002, %v1145
    %v1147 = vpop.f32.mrb[0].mxu0
    %1148 = vdwg.mxu0
    %1149 = vst [vmem:[#allocation13] sm:$0xff] %v1087
    %1150 = vst [vmem:[#allocation13 + $0x8] sm:$0xff] %v1090
    %1151 = vst [vmem:[#allocation13 + $0x10] sm:$0xff] %v1095
    %1152 = vst [vmem:[#allocation13 + $0x18] sm:$0xff] %v1098
    %1153 = vst [vmem:[#allocation13 + $0x20] sm:$0xff] %v1103
    %1154 = vst [vmem:[#allocation13 + $0x28] sm:$0xff] %v1106
    %1155 = vst [vmem:[#allocation13 + $0x30] sm:$0xff] %v1111
    %1156 = vst [vmem:[#allocation13 + $0x38] sm:$0xff] %v1114
    %1157 = vst [vmem:[#allocation13 + $0x40] sm:$0xff] %v1119
    %1158 = vst [vmem:[#allocation13 + $0x48] sm:$0xff] %v1122
    %1159 = vst [vmem:[#allocation13 + $0x50] sm:$0xff] %v1127
    %1160 = vst [vmem:[#allocation13 + $0x58] sm:$0xff] %v1130
    %1161 = vst [vmem:[#allocation13 + $0x60] sm:$0xff] %v1135
    %1162 = vst [vmem:[#allocation13 + $0x68] sm:$0xff] %v1138
    %1163 = vst [vmem:[#allocation13 + $0x70] sm:$0xff] %v1143
    %1164 = vst [vmem:[#allocation13 + $0x78] sm:$0xff] %v1146
    // Predicated region
    $region66: #{tpu_custom_call.1} parent=1 // pred_check
      _
    $region67: #{tpu_custom_call.1} parent=1 // pred_check_branch
      %1166 = sbr.rel (0) target = $region69
    $region68: #{tpu_custom_call.1} parent=1 // pred_region
      %s1168 = ssub.s32 2048, 2048
      %1169 = vsyncadd [#allocation4], %s1168
      %s1170 = sshll.u32 [#allocation13], 4
      %s1171 = int_to_ptr.vmem [resolvable:$true] %s1170
      %1176 = dma.vmem_to_hbm [thread:$0]  %s1171, 2048, %s10, [#allocation4], 128, 128, 8
    $region69: #{tpu_custom_call.1} parent=1 // pred_fallthru
      _
    // Predicated region
    $region70: #{tpu_custom_call.1} parent=1 // pred_check
      _
    $region71: #{tpu_custom_call.1} parent=1 // pred_check_branch
      %1178 = sbr.rel (0) target = $region73
    $region72: #{tpu_custom_call.1} parent=1 // pred_region
      %1179 = dma.done [#allocation4], 2048
    $region73: #{tpu_custom_call.1} parent=1 // pred_fallthru
      _
    %1180 = vsyncpa [#allocation3], 1
    %1181 = vsyncpa [#allocation6], 1
    %1182 = vsyncpa [#allocation9], 1
    %1183 = vsyncpa [#allocation12], 1
    %1184 = vsyncpa [#allocation4], 1

</llo_original>
